<compile_context>
chip_gen: v5e
topology: v5e:2x2
jax: 0.10.0
libtpu: 0.0.40
codegen_flags: <defaults>
</compile_context>

<pallas_src>
import functools

import jax
import jax.numpy as jnp
from jax.experimental import pallas as pl
from jax.experimental.pallas import tpu as pltpu


# ----------------------------------------------------------------------------
# Pallas kernel: fused poly-features + (W_eff @ features) + max_action*tanh(.)
# Batch-on-lanes layout.
# ----------------------------------------------------------------------------
def _actor_kernel(xt_ref, wt_ref, out_ref, *, max_action):
    """xt_ref: (n, TB) raw states (batch on lanes; scale folded into weights)
    wt_ref: (N, K)  effective weights, heads (N=8) on sublanes
    out_ref: (N, TB) lane-dense output tile
    """
    xt = xt_ref[...]
    wt = wt_ref[...]
    n, tb = xt.shape
    nout = out_ref.shape[0]

    # Lane-dense (1, TB) rows of x, hoisted once.
    xr = [xt[i:i + 1, :] for i in range(n)]

    # Polynomial feature terms in sklearn PolynomialFeatures(degree=2) column
    # order [1, x_i, x_i*x_j (i<=j)].  The bias column (index 0) is handled by
    # initializing the first partial accumulator with a broadcast of wt[:, 0].
    terms = list(xr)                       # columns 1..n
    for i in range(n):
        for j in range(i, n):
            terms.append(xr[i] * xr[j])    # columns 1+n .. K-1

    # 4 independent partial accumulators break the serial acc += chain so the
    # 4 VALU slots can co-issue the unrolled rank-1 updates.  Each wt column
    # is used exactly once, so there is no repeated broadcast to hoist/CSE;
    # the sublane/lane broadcasts are fused into the multiplies below.
    n_acc = 4
    parts = [None] * n_acc
    parts[0] = jnp.broadcast_to(wt[:, 0:1], (nout, tb)).astype(jnp.float32)
    for t, term in enumerate(terms):
        k = t + 1                                   # poly-feature column index
        a = k % n_acc
        contrib = term * wt[:, k:k + 1]             # (1,TB)*(N,1) -> (N,TB)
        parts[a] = contrib if parts[a] is None else parts[a] + contrib
    acc = functools.reduce(lambda u, v: u + v, [p for p in parts if p is not None])

    out_ref[...] = (max_action * jnp.tanh(acc)).astype(out_ref.dtype)


# ----------------------------------------------------------------------------
# Wrapper
# ----------------------------------------------------------------------------
def actor_pallas(x, w_eff_t, max_action, *, batch_tile=None):
    """x: (B, state_dim) raw states (f32); w_eff_t: (8, coef_dim) effective weights."""
    B, n = x.shape
    N, K = w_eff_t.shape
    assert K == 1 + n + n * (n + 1) // 2, "coef_dim must match degree-2 poly of state_dim"

    # Batch-on-lanes layouts.  (In production the caller should ideally hold
    # the state batch in (n, B) layout already; this transpose is a tiny XLA op.)
    xt = x.T                                                   # (n, B)
    kernel = functools.partial(_actor_kernel, max_action=float(max_action))

    if batch_tile is None:
        if B <= 2048:
            batch_tile = B
        else:
            # >= 2 grid steps so v7x's two TensorCores both get work; tiles
            # are lane-aligned (multiple of 128) and capped at 8192 lanes.
            batch_tile = min(8192, 128 * pl.cdiv(pl.cdiv(B, 2), 128))

    if B <= batch_tile:
        # Grid-less call: all operands resident in VMEM, no pipeline
        # bookkeeping for a ~microsecond kernel.  (Single-TC by construction.)
        out_t = pl.pallas_call(
            kernel,
            out_shape=jax.ShapeDtypeStruct((N, B), jnp.float32),
            in_specs=[
                pl.BlockSpec(memory_space=pltpu.MemorySpace.VMEM),
                pl.BlockSpec(memory_space=pltpu.MemorySpace.VMEM),
            ],
            out_specs=pl.BlockSpec(memory_space=pltpu.MemorySpace.VMEM),
        )(xt, w_eff_t)
        return out_t.T

    # Batch-tiled grid path: batch axis "parallel" (megacore sharding on v7x),
    # tiny weight tile resident via a constant index_map.  Ragged last block
    # (B not a multiple of batch_tile) is masked by Pallas -- no pad/slice.
    batch_tile = 128 * pl.cdiv(batch_tile, 128)
    grid = (pl.cdiv(B, batch_tile),)

    # VMEM budget derived from the actual double-buffered tile bytes:
    # x tile and out tile each pad to 8 sublanes; weight pads to (8, 128k).
    tile_bytes = 4 * batch_tile * (8 + 8)
    w_bytes = 4 * 8 * (128 * pl.cdiv(K, 128))
    vmem_limit = int(min(32 << 20, 2 * (tile_bytes + w_bytes) + (4 << 20)))

    out_t = pl.pallas_call(
        kernel,
        out_shape=jax.ShapeDtypeStruct((N, B), jnp.float32),
        grid=grid,
        in_specs=[
            pl.BlockSpec((n, batch_tile), lambda i: (0, i)),
            pl.BlockSpec((N, K), lambda i: (0, 0)),
        ],
        out_specs=pl.BlockSpec((N, batch_tile), lambda i: (0, i)),
        compiler_params=pltpu.CompilerParams(
            dimension_semantics=("parallel",),
            vmem_limit_bytes=vmem_limit,
        ),
    )(xt, w_eff_t)
    return out_t.T


# ----------------------------------------------------------------------------
# One-time weight preprocessing (independent of x; hoisted out of the forward)
# ----------------------------------------------------------------------------
def _feature_scale_vector(state_dim, scale):
    """Per-feature factor equivalent to dividing x[:,0] and x[:,1] by `scale`."""
    inv = [1.0] * state_dim
    inv[0] = 1.0 / float(scale)
    inv[1] = 1.0 / float(scale)
    s = [1.0] + inv
    for i in range(state_dim):
        for j in range(i, state_dim):
            s.append(inv[i] * inv[j])
    return jnp.asarray(s, dtype=jnp.float32)


def prepare_actor_weight(weight, qz_loga, *, state_dim, scale,
                         gamma=-0.1, zeta=1.1):
    """weight, qz_loga: stacked (coef_dim, 8) params of the 8 L0Dense layers.

    Eval-mode L0 hard-concrete gate z = clip(sigmoid(qz)*(zeta-gamma)+gamma, 0, 1);
    the x[:, 0:2] /= scale normalization is folded into the rows corresponding
    to poly features touching x_0/x_1.  Returned pre-transposed as (8, coef_dim)
    (heads on sublanes) so no layout work remains in the forward path.
    """
    z = jnp.clip(jax.nn.sigmoid(qz_loga) * (zeta - gamma) + gamma, 0.0, 1.0)
    s = _feature_scale_vector(state_dim, scale)
    w_eff = (weight * z) * s[:, None]          # (coef_dim, 8)
    return w_eff.T                             # (8, coef_dim)


def actor_forward(x, w_eff_t, max_action=1.0, *, batch_tile=None):
    """Full Actor forward (features + masked linear heads + tanh) in one kernel."""
    return actor_pallas(x, w_eff_t, max_action, batch_tile=batch_tile)


# ----------------------------------------------------------------------------
# Pure-JAX reference (mirrors the original torch forward semantics)
# ----------------------------------------------------------------------------
def poly_fit_transform_deg2(x):
    """sklearn PolynomialFeatures(degree=2) column order: [1, x_i, x_i*x_j (i<=j)]."""
    B, n = x.shape
    cols = [jnp.ones((B, 1), dtype=x.dtype), x]
    for i in range(n):
        for j in range(i, n):
            cols.append((x[:, i] * x[:, j])[:, None])
    return jnp.concatenate(cols, axis=1)


def actor_reference(x, weight, qz_loga, max_action=1.0, scale=400.0,
                    gamma=-0.1, zeta=1.1):
    x = x.at[:, 0].divide(scale)
    x = x.at[:, 1].divide(scale)
    p = poly_fit_transform_deg2(x)
    z = jnp.clip(jax.nn.sigmoid(qz_loga) * (zeta - gamma) + gamma, 0.0, 1.0)
    return max_action * jnp.tanh(p @ (weight * z))


if __name__ == "__main__":
    batch = 8
    state_dim = 4
    coef_dim = 1 + state_dim + state_dim * (state_dim + 1) // 2  # 15
    max_action = 1.0
    scale = 400.0
    droprate = 0.2

    key = jax.random.PRNGKey(0)
    kx, kw, kq, kx2 = jax.random.split(key, 4)

    # columns 0,1 are "large" (they get divided by scale=400), columns 2,3 moderate
    col_scale = jnp.array([200.0, 200.0, 2.0, 2.0], dtype=jnp.float32)
    x = jax.random.normal(kx, (batch, state_dim), dtype=jnp.float32) * col_scale

    qz_init_mean = jnp.log(1.0 - droprate) - jnp.log(droprate)
    weight = 0.1 * jax.random.normal(kw, (coef_dim, 8), dtype=jnp.float32)
    qz_loga = qz_init_mean + 1e-2 * jax.random.normal(
        kq, (coef_dim, 8), dtype=jnp.float32)

    # Hoisted once (does not depend on x): L0 gate + scale folding + transpose.
    w_eff_t = prepare_actor_weight(weight, qz_loga, state_dim=state_dim, scale=scale)

    # Small batch: grid-less path.
    out = jax.block_until_ready(actor_forward(x, w_eff_t, max_action))
    ref = actor_reference(x, weight, qz_loga, max_action=max_action, scale=scale)
    assert out.shape == (batch, 8)
    assert float(jnp.max(jnp.abs(out - ref))) < 1e-4

    # Larger, non-tile-aligned batch: exercises the batch-tiled "parallel" grid
    # path with a ragged last block (no wrapper pad/slice).
    B2 = 4000
    x2 = jax.random.normal(kx2, (B2, state_dim), dtype=jnp.float32) * col_scale
    out2 = jax.block_until_ready(actor_forward(x2, w_eff_t, max_action))
    ref2 = actor_reference(x2, weight, qz_loga, max_action=max_action, scale=scale)
    assert out2.shape == (B2, 8)
    assert float(jnp.max(jnp.abs(out2 - ref2))) < 1e-4

    # Same large batch with an explicit (non-128-multiple) tile: rounding + more grid steps.
    out3 = jax.block_until_ready(actor_forward(x2, w_eff_t, max_action, batch_tile=384))
    assert out3.shape == (B2, 8)
    assert float(jnp.max(jnp.abs(out3 - ref2))) < 1e-4

    print("KERNEL_OK")
</pallas_src>

<mosaic_0001>
module attributes {stable_mosaic.version = 11 : i64} {
  func.func @_actor_kernel(%arg0: memref<4x8xf32, #tpu.memory_space<vmem>>, %arg1: memref<8x15xf32, #tpu.memory_space<vmem>>, %arg2: memref<8x8xf32, #tpu.memory_space<vmem>>) attributes {dimension_semantics = [], scalar_prefetch = 0 : i64, scratch_operands = 0 : i64, tpu.core_type = #tpu.core_type<tc>} {
    %c0 = arith.constant 0 : index
    %c0_0 = arith.constant 0 : index
    %0 = vector.load %arg0[%c0, %c0_0] : memref<4x8xf32, #tpu.memory_space<vmem>>, vector<4x8xf32>
    %c0_1 = arith.constant 0 : index
    %c0_2 = arith.constant 0 : index
    %1 = vector.load %arg1[%c0_1, %c0_2] : memref<8x15xf32, #tpu.memory_space<vmem>>, vector<8x15xf32>
    %2 = vector.extract_strided_slice %0 {offsets = [0, 0], sizes = [1, 8], strides = [1, 1]} : vector<4x8xf32> to vector<1x8xf32>
    %3 = vector.extract_strided_slice %0 {offsets = [1, 0], sizes = [1, 8], strides = [1, 1]} : vector<4x8xf32> to vector<1x8xf32>
    %4 = vector.extract_strided_slice %0 {offsets = [2, 0], sizes = [1, 8], strides = [1, 1]} : vector<4x8xf32> to vector<1x8xf32>
    %5 = vector.extract_strided_slice %0 {offsets = [3, 0], sizes = [1, 8], strides = [1, 1]} : vector<4x8xf32> to vector<1x8xf32>
    %6 = arith.mulf %2, %2 : vector<1x8xf32>
    %7 = arith.mulf %2, %3 : vector<1x8xf32>
    %8 = arith.mulf %2, %4 : vector<1x8xf32>
    %9 = arith.mulf %2, %5 : vector<1x8xf32>
    %10 = arith.mulf %3, %3 : vector<1x8xf32>
    %11 = arith.mulf %3, %4 : vector<1x8xf32>
    %12 = arith.mulf %3, %5 : vector<1x8xf32>
    %13 = arith.mulf %4, %4 : vector<1x8xf32>
    %14 = arith.mulf %4, %5 : vector<1x8xf32>
    %15 = arith.mulf %5, %5 : vector<1x8xf32>
    %16 = vector.extract_strided_slice %1 {offsets = [0, 0], sizes = [8, 1], strides = [1, 1]} : vector<8x15xf32> to vector<8x1xf32>
    %17 = vector.shape_cast %16 : vector<8x1xf32> to vector<8x1xf32>
    %18 = vector.broadcast %17 : vector<8x1xf32> to vector<8x8xf32>
    %19 = vector.extract_strided_slice %1 {offsets = [0, 1], sizes = [8, 1], strides = [1, 1]} : vector<8x15xf32> to vector<8x1xf32>
    %20 = vector.broadcast %2 : vector<1x8xf32> to vector<8x8xf32>
    %21 = vector.broadcast %19 : vector<8x1xf32> to vector<8x8xf32>
    %22 = arith.mulf %20, %21 : vector<8x8xf32>
    %23 = vector.extract_strided_slice %1 {offsets = [0, 2], sizes = [8, 1], strides = [1, 1]} : vector<8x15xf32> to vector<8x1xf32>
    %24 = vector.broadcast %3 : vector<1x8xf32> to vector<8x8xf32>
    %25 = vector.broadcast %23 : vector<8x1xf32> to vector<8x8xf32>
    %26 = arith.mulf %24, %25 : vector<8x8xf32>
    %27 = vector.extract_strided_slice %1 {offsets = [0, 3], sizes = [8, 1], strides = [1, 1]} : vector<8x15xf32> to vector<8x1xf32>
    %28 = vector.broadcast %4 : vector<1x8xf32> to vector<8x8xf32>
    %29 = vector.broadcast %27 : vector<8x1xf32> to vector<8x8xf32>
    %30 = arith.mulf %28, %29 : vector<8x8xf32>
    %31 = vector.extract_strided_slice %1 {offsets = [0, 4], sizes = [8, 1], strides = [1, 1]} : vector<8x15xf32> to vector<8x1xf32>
    %32 = vector.broadcast %5 : vector<1x8xf32> to vector<8x8xf32>
    %33 = vector.broadcast %31 : vector<8x1xf32> to vector<8x8xf32>
    %34 = arith.mulf %32, %33 : vector<8x8xf32>
    %35 = arith.addf %18, %34 : vector<8x8xf32>
    %36 = vector.extract_strided_slice %1 {offsets = [0, 5], sizes = [8, 1], strides = [1, 1]} : vector<8x15xf32> to vector<8x1xf32>
    %37 = vector.broadcast %6 : vector<1x8xf32> to vector<8x8xf32>
    %38 = vector.broadcast %36 : vector<8x1xf32> to vector<8x8xf32>
    %39 = arith.mulf %37, %38 : vector<8x8xf32>
    %40 = arith.addf %22, %39 : vector<8x8xf32>
    %41 = vector.extract_strided_slice %1 {offsets = [0, 6], sizes = [8, 1], strides = [1, 1]} : vector<8x15xf32> to vector<8x1xf32>
    %42 = vector.broadcast %7 : vector<1x8xf32> to vector<8x8xf32>
    %43 = vector.broadcast %41 : vector<8x1xf32> to vector<8x8xf32>
    %44 = arith.mulf %42, %43 : vector<8x8xf32>
    %45 = arith.addf %26, %44 : vector<8x8xf32>
    %46 = vector.extract_strided_slice %1 {offsets = [0, 7], sizes = [8, 1], strides = [1, 1]} : vector<8x15xf32> to vector<8x1xf32>
    %47 = vector.broadcast %8 : vector<1x8xf32> to vector<8x8xf32>
    %48 = vector.broadcast %46 : vector<8x1xf32> to vector<8x8xf32>
    %49 = arith.mulf %47, %48 : vector<8x8xf32>
    %50 = arith.addf %30, %49 : vector<8x8xf32>
    %51 = vector.extract_strided_slice %1 {offsets = [0, 8], sizes = [8, 1], strides = [1, 1]} : vector<8x15xf32> to vector<8x1xf32>
    %52 = vector.broadcast %9 : vector<1x8xf32> to vector<8x8xf32>
    %53 = vector.broadcast %51 : vector<8x1xf32> to vector<8x8xf32>
    %54 = arith.mulf %52, %53 : vector<8x8xf32>
    %55 = arith.addf %35, %54 : vector<8x8xf32>
    %56 = vector.extract_strided_slice %1 {offsets = [0, 9], sizes = [8, 1], strides = [1, 1]} : vector<8x15xf32> to vector<8x1xf32>
    %57 = vector.broadcast %10 : vector<1x8xf32> to vector<8x8xf32>
    %58 = vector.broadcast %56 : vector<8x1xf32> to vector<8x8xf32>
    %59 = arith.mulf %57, %58 : vector<8x8xf32>
    %60 = arith.addf %40, %59 : vector<8x8xf32>
    %61 = vector.extract_strided_slice %1 {offsets = [0, 10], sizes = [8, 1], strides = [1, 1]} : vector<8x15xf32> to vector<8x1xf32>
    %62 = vector.broadcast %11 : vector<1x8xf32> to vector<8x8xf32>
    %63 = vector.broadcast %61 : vector<8x1xf32> to vector<8x8xf32>
    %64 = arith.mulf %62, %63 : vector<8x8xf32>
    %65 = arith.addf %45, %64 : vector<8x8xf32>
    %66 = vector.extract_strided_slice %1 {offsets = [0, 11], sizes = [8, 1], strides = [1, 1]} : vector<8x15xf32> to vector<8x1xf32>
    %67 = vector.broadcast %12 : vector<1x8xf32> to vector<8x8xf32>
    %68 = vector.broadcast %66 : vector<8x1xf32> to vector<8x8xf32>
    %69 = arith.mulf %67, %68 : vector<8x8xf32>
    %70 = arith.addf %50, %69 : vector<8x8xf32>
    %71 = vector.extract_strided_slice %1 {offsets = [0, 12], sizes = [8, 1], strides = [1, 1]} : vector<8x15xf32> to vector<8x1xf32>
    %72 = vector.broadcast %13 : vector<1x8xf32> to vector<8x8xf32>
    %73 = vector.broadcast %71 : vector<8x1xf32> to vector<8x8xf32>
    %74 = arith.mulf %72, %73 : vector<8x8xf32>
    %75 = arith.addf %55, %74 : vector<8x8xf32>
    %76 = vector.extract_strided_slice %1 {offsets = [0, 13], sizes = [8, 1], strides = [1, 1]} : vector<8x15xf32> to vector<8x1xf32>
    %77 = vector.broadcast %14 : vector<1x8xf32> to vector<8x8xf32>
    %78 = vector.broadcast %76 : vector<8x1xf32> to vector<8x8xf32>
    %79 = arith.mulf %77, %78 : vector<8x8xf32>
    %80 = arith.addf %60, %79 : vector<8x8xf32>
    %81 = vector.extract_strided_slice %1 {offsets = [0, 14], sizes = [8, 1], strides = [1, 1]} : vector<8x15xf32> to vector<8x1xf32>
    %82 = vector.broadcast %15 : vector<1x8xf32> to vector<8x8xf32>
    %83 = vector.broadcast %81 : vector<8x1xf32> to vector<8x8xf32>
    %84 = arith.mulf %82, %83 : vector<8x8xf32>
    %85 = arith.addf %65, %84 : vector<8x8xf32>
    %86 = arith.addf %75, %80 : vector<8x8xf32>
    %87 = arith.addf %86, %85 : vector<8x8xf32>
    %88 = arith.addf %87, %70 : vector<8x8xf32>
    %89 = math.tanh %88 : vector<8x8xf32>
    %cst = arith.constant 1.000000e+00 : f32
    %90 = vector.broadcast %cst : f32 to vector<8x8xf32>
    %91 = arith.mulf %90, %89 : vector<8x8xf32>
    %c0_3 = arith.constant 0 : index
    %c0_4 = arith.constant 0 : index
    %92 = vector.load %arg2[%c0_3, %c0_4] : memref<8x8xf32, #tpu.memory_space<vmem>>, vector<8x8xf32>
    tpu.vector_store %arg2[%c0_3, %c0_4], %91 {strides = array<i32>} : memref<8x8xf32, #tpu.memory_space<vmem>>, vector<8x8xf32>,
    return
  }
}

</mosaic_0001>

<llo_original>
// kernel: tpu_custom_call.1
$region0: #{tpu_custom_call.1}
  #allocation0 [shape = 'u32[]', space=smem, size = 0x4, offset = 0x4, fixed_abs, tag = 'smem constant byte address 0x4 - core index']
  #allocation1 [shape = 'u32[72,128]{1,0:T(1,128)}', space=vmem, size = 0x9000, scoped, tag = 'internal scratch']
  %s0 = inlined_call_operand.hbm [shape: f32[4,8], index: 0, kind: input, shape index: {}]
  %s1 = inlined_call_operand.hbm [shape: f32[8,15], index: 1, kind: input, shape index: {}]
  %s2 = inlined_call_operand.hbm [shape: f32[8,8], index: 2, kind: output, shape index: {}]
  %s3 = sld [smem:[#allocation0]]
  $region26: #{tpu_custom_call.1} parent=0
    _
  %s5 = ssub.s32 1, %s3
  %s6 = scalar_select 0, %s5, %s3
  $region1: #{tpu_custom_call.1} parent=0
    #allocation2 [shape = 'u8[2048]{0}', space=vmem, size = 0x800, scoped, tag = 'input window, operand 0, single buffered']
    #allocation3 [shape = 's32[1]{0}', space=sflag, size = 0x4, scoped, tag = 'scoped memory for tpu_custom_call.1']
    #allocation4 [shape = 's32[1]{0}', space=sflag, size = 0x4, scoped, tag = 'scoped memory for tpu_custom_call.1']
    #allocation5 [shape = 'u8[4096]{0}', space=vmem, size = 0x1000, scoped, tag = 'input window, operand 1, single buffered']
    #allocation6 [shape = 's32[1]{0}', space=sflag, size = 0x4, scoped, tag = 'scoped memory for tpu_custom_call.1']
    #allocation7 [shape = 'u8[4096]{0}', space=vmem, size = 0x1000, scoped, tag = 'output window, operand 0, single buffered']
    %7 = vsyncpa [#allocation3], 0
    %8 = vsyncpa [#allocation6], 0
    %9 = vsyncpa [#allocation4], 0
    // Predicated region
    $region2: #{tpu_custom_call.1} parent=1 // pred_check
      _
    $region3: #{tpu_custom_call.1} parent=1 // pred_check_branch
      %11 = sbr.rel (0) target = $region5
    $region4: #{tpu_custom_call.1} parent=1 // pred_region
      %13 = vsyncadd [#allocation3], 0
      %s15 = sshll.u32 %s0, 4
      %s16 = int_to_ptr.hbm [resolvable:$true] %s15
      %s17 = sshll.u32 [#allocation2], 4
      %s18 = int_to_ptr.vmem [resolvable:$true] %s17
      %20 = dma.hbm_to_vmem [thread:$0]  %s16, 64, %s18, [#allocation3]
    $region5: #{tpu_custom_call.1} parent=1 // pred_fallthru
      _
    // Predicated region
    $region6: #{tpu_custom_call.1} parent=1 // pred_check
      _
    $region7: #{tpu_custom_call.1} parent=1 // pred_check_branch
      %22 = sbr.rel (0) target = $region9
    $region8: #{tpu_custom_call.1} parent=1 // pred_region
      %24 = vsyncadd [#allocation6], 0
      %s26 = sshll.u32 %s1, 4
      %s27 = int_to_ptr.hbm [resolvable:$true] %s26
      %s28 = sshll.u32 [#allocation5], 4
      %s29 = int_to_ptr.vmem [resolvable:$true] %s28
      %31 = dma.hbm_to_vmem [thread:$0]  %s27, 128, %s29, [#allocation6]
    $region9: #{tpu_custom_call.1} parent=1 // pred_fallthru
      _
    // Predicated region
    $region10: #{tpu_custom_call.1} parent=1 // pred_check
      _
    $region11: #{tpu_custom_call.1} parent=1 // pred_check_branch
      %33 = sbr.rel (0) target = $region13
    $region12: #{tpu_custom_call.1} parent=1 // pred_region
      %35 = dma.done [#allocation3], 64
    $region13: #{tpu_custom_call.1} parent=1 // pred_fallthru
      _
    // Predicated region
    $region14: #{tpu_custom_call.1} parent=1 // pred_check
      _
    $region15: #{tpu_custom_call.1} parent=1 // pred_check_branch
      %37 = sbr.rel (0) target = $region17
    $region16: #{tpu_custom_call.1} parent=1 // pred_region
      %39 = dma.done [#allocation6], 128
    $region17: #{tpu_custom_call.1} parent=1 // pred_fallthru
      _
    %v40 = vld [vmem:[#allocation2] sm:$0xf]
    %v41 = vld [vmem:[#allocation5] sm:$0xff]
    %v42 = vmul.f32 %v40, %v40
    %v44 = vrot.slane %v40, 1
    %v46 = vmul.f32 %v40, %v44
    %v47 = vrot.slane %v40, 2
    %v49 = vmul.f32 %v40, %v47
    %v50 = vrot.slane %v40, 3
    %v52 = vmul.f32 %v40, %v50
    %54 = vset.pattern.permute.xlu0 0
    %55 = vperm.xlu0 %54, %v41
    %v56 = vpop.permute.xlu0 %55
    %v58 = vperm.slane %v40, 0
    %59 = vset.pattern.permute.xlu0 1
    %60 = vperm.xlu0 %59, %v41
    %v61 = vpop.permute.xlu0 %60
    %v63 = vmul.f32 %v58, %v61
    %v64 = vperm.slane %v40, 1
    %65 = vset.pattern.permute.xlu0 2
    %66 = vperm.xlu0 %65, %v41
    %v67 = vpop.permute.xlu0 %66
    %v69 = vmul.f32 %v64, %v67
    %v70 = vperm.slane %v40, 2
    %71 = vset.pattern.permute.xlu0 3
    %72 = vperm.xlu0 %71, %v41
    %v73 = vpop.permute.xlu0 %72
    %v75 = vmul.f32 %v70, %v73
    %v76 = vperm.slane %v40, 3
    %77 = vset.pattern.permute.xlu0 4
    %78 = vperm.xlu0 %77, %v41
    %v79 = vpop.permute.xlu0 %78
    %v81 = vmul.f32 %v76, %v79
    %v82 = vadd.f32 %v56, %v81
    %v83 = vperm.slane %v42, 0
    %84 = vset.pattern.permute.xlu0 5
    %85 = vperm.xlu0 %84, %v41
    %v86 = vpop.permute.xlu0 %85
    %v88 = vmul.f32 %v83, %v86
    %v89 = vadd.f32 %v63, %v88
    %v90 = vperm.slane %v46, 0
    %91 = vset.pattern.permute.xlu0 6
    %92 = vperm.xlu0 %91, %v41
    %v93 = vpop.permute.xlu0 %92
    %v95 = vmul.f32 %v90, %v93
    %v96 = vadd.f32 %v69, %v95
    %v97 = vperm.slane %v49, 0
    %98 = vset.pattern.permute.xlu0 7
    %99 = vperm.xlu0 %98, %v41
    %v100 = vpop.permute.xlu0 %99
    %v102 = vmul.f32 %v97, %v100
    %v103 = vadd.f32 %v75, %v102
    %v104 = vperm.slane %v52, 0
    %105 = vset.pattern.permute.xlu0 8
    %106 = vperm.xlu0 %105, %v41
    %v107 = vpop.permute.xlu0 %106
    %v109 = vmul.f32 %v104, %v107
    %v110 = vadd.f32 %v82, %v109
    %v111 = vperm.slane %v42, 1
    %112 = vset.pattern.permute.xlu0 9
    %113 = vperm.xlu0 %112, %v41
    %v114 = vpop.permute.xlu0 %113
    %v116 = vmul.f32 %v111, %v114
    %v117 = vadd.f32 %v89, %v116
    %v118 = vperm.slane %v46, 1
    %119 = vset.pattern.permute.xlu0 10
    %120 = vperm.xlu0 %119, %v41
    %v121 = vpop.permute.xlu0 %120
    %v123 = vmul.f32 %v118, %v121
    %v124 = vadd.f32 %v96, %v123
    %v125 = vperm.slane %v49, 1
    %126 = vset.pattern.permute.xlu0 11
    %127 = vperm.xlu0 %126, %v41
    %v128 = vpop.permute.xlu0 %127
    %v130 = vmul.f32 %v125, %v128
    %v131 = vadd.f32 %v103, %v130
    %v132 = vperm.slane %v42, 2
    %133 = vset.pattern.permute.xlu0 12
    %134 = vperm.xlu0 %133, %v41
    %v135 = vpop.permute.xlu0 %134
    %v137 = vmul.f32 %v132, %v135
    %v138 = vadd.f32 %v110, %v137
    %v139 = vperm.slane %v46, 2
    %140 = vset.pattern.permute.xlu0 13
    %141 = vperm.xlu0 %140, %v41
    %v142 = vpop.permute.xlu0 %141
    %v144 = vmul.f32 %v139, %v142
    %v145 = vadd.f32 %v117, %v144
    %v146 = vperm.slane %v42, 3
    %147 = vset.pattern.permute.xlu0 14
    %148 = vperm.xlu0 %147, %v41
    %v149 = vpop.permute.xlu0 %148
    %v151 = vmul.f32 %v146, %v149
    %v152 = vadd.f32 %v124, %v151
    %v153 = vadd.f32 %v138, %v145
    %v154 = vadd.f32 %v153, %v152
    %v155 = vadd.f32 %v154, %v131
    %v156 = vtanh.pop %v155
    %vm157 = vcmask 64512
    %158 = vst.msk [vmem:[#allocation7] sm:$0xff] %vm157, %v156
    // Predicated region
    $region18: #{tpu_custom_call.1} parent=1 // pred_check
      _
    $region19: #{tpu_custom_call.1} parent=1 // pred_check_branch
      %160 = sbr.rel (0) target = $region21
    $region20: #{tpu_custom_call.1} parent=1 // pred_region
      %162 = vsyncadd [#allocation4], 0
      %s164 = sshll.u32 [#allocation7], 4
      %s165 = int_to_ptr.vmem [resolvable:$true] %s164
      %s166 = sshll.u32 %s2, 4
      %s167 = int_to_ptr.hbm [resolvable:$true] %s166
      %169 = dma.vmem_to_hbm [thread:$0]  %s165, 128, %s167, [#allocation4]
    $region21: #{tpu_custom_call.1} parent=1 // pred_fallthru
      _
    // Predicated region
    $region22: #{tpu_custom_call.1} parent=1 // pred_check
      _
    $region23: #{tpu_custom_call.1} parent=1 // pred_check_branch
      %171 = sbr.rel (0) target = $region25
    $region24: #{tpu_custom_call.1} parent=1 // pred_region
      %173 = dma.done [#allocation4], 128
    $region25: #{tpu_custom_call.1} parent=1 // pred_fallthru
      _
    %174 = vsyncpa [#allocation3], 1
    %175 = vsyncpa [#allocation6], 1
    %176 = vsyncpa [#allocation4], 1

</llo_original>
